<compile_context>
chip_gen: v7x
topology: tpu7x:2x2x1
jax: 0.10.0
libtpu: 0.0.40
codegen_flags: <defaults>
</compile_context>

<pallas_src>
import jax
import jax.numpy as jnp
from jax.experimental import pallas as pl
from jax.experimental.pallas import tpu as pltpu


# ------------------------------ kernel ------------------------------

def _autoencoder_kernel(x_ref,
                        w1_ref, b1_ref, w2_ref, b2_ref, w3_ref, b3_ref,
                        w4_ref, b4_ref, w5_ref, b5_ref, w6_ref, b6_ref,
                        out_ref):
    """Fused encoder+decoder MLP on one (tile_B, D_pad) batch tile.

    Weights are pre-transposed to (in_features, out_features) bf16; biases are
    (1, out) f32.  Every layer is one batched (tb, K) @ (K, N) MXU matmul with
    f32 accumulation; elementwise ops (ReLU, sigmoid) run in f32 on VPU/EUP.
    """
    def lin(h, w_ref, b_ref):
        return jnp.dot(h.astype(jnp.bfloat16), w_ref[...],
                       preferred_element_type=jnp.float32) + b_ref[...]

    h = x_ref[...]                                   # bf16 input tile
    # ----- encoder -----
    h = jnp.maximum(lin(h, w1_ref, b1_ref), 0.0)     # ReLU (f32, VPU)
    h = jnp.maximum(lin(h, w2_ref, b2_ref), 0.0)
    h = lin(h, w3_ref, b3_ref)                       # encoding (no ReLU)
    # ----- decoder -----
    h = jnp.maximum(lin(h, w4_ref, b4_ref), 0.0)
    h = jnp.maximum(lin(h, w5_ref, b5_ref), 0.0)
    h = lin(h, w6_ref, b6_ref)
    # Sigmoid (EUP) + one contiguous lane-dense store of the whole tile.
    out_ref[...] = jax.nn.sigmoid(h)


# ------------------------------ wrapper ------------------------------

_PARAM_NAMES = ("w1", "b1", "w2", "b2", "w3", "b3",
                "w4", "b4", "w5", "b5", "w6", "b6")


def _round_up(n, m):
    return ((n + m - 1) // m) * m


def autoencoder_forward(x, params, *, block_b=None):
    """x: (B, input_dim) f32 -> (B, input_dim) f32."""
    B, D = x.shape
    assert params["w1"].shape[0] == D and params["w6"].shape[1] == D

    # ---- lane-dense feature padding (full 128-lane loads/stores) ----
    D_pad = _round_up(D, 128)

    # ---- pack params once: pad boundary layers to D_pad, cast weights to bf16 ----
    w = {k: params[k] for k in _PARAM_NAMES}
    if D_pad != D:
        w["w1"] = jnp.pad(w["w1"], ((0, D_pad - D), (0, 0)))   # padded x cols are 0
        w["w6"] = jnp.pad(w["w6"], ((0, 0), (0, D_pad - D)))   # padded outs sliced off
        w["b6"] = jnp.pad(w["b6"], ((0, 0), (0, D_pad - D)))
    packed = []
    for name in _PARAM_NAMES:
        a = w[name]
        if name.startswith("w"):
            a = a.astype(jnp.bfloat16)       # MXU-native operands; accum stays f32
        packed.append(a)

    # ---- per-generation batch tile ----
    vmem_cap = 64 << 20                       # conservative default (v7x-sized)
    try:
        vmem_cap = int(pltpu.get_tpu_info().vmem_capacity_bytes)
    except Exception:
        pass
    if block_b is None:
        block_b = 512 if vmem_cap <= (64 << 20) else 1024      # v7x vs v5e/v6e

    b8 = _round_up(B, 8)
    tb = min(block_b, b8)
    # keep double-buffered x(bf16) + out(f32) tiles within ~12 MiB of VMEM
    per_row = 2 * (2 + 4) * D_pad
    tb = min(tb, max(8, ((12 << 20) // per_row) // 8 * 8))
    # prefer >=2 grid steps when the batch allows it (v7x dual TensorCores)
    if tb >= b8 and b8 >= 16:
        tb = _round_up((b8 + 1) // 2, 8)

    B_pad = _round_up(B, tb)

    # ---- single pad pass over x only when strictly needed, cast to bf16 ----
    x_in = x
    if (B_pad != B) or (D_pad != D):
        x_in = jnp.pad(x_in, ((0, B_pad - B), (0, D_pad - D)))
    x_in = x_in.astype(jnp.bfloat16)

    grid = (B_pad // tb,)

    def resident_spec(a):
        # Same block index every grid step -> DMA'd once, resident in VMEM.
        return pl.BlockSpec(a.shape, lambda i: (0, 0))

    in_specs = [pl.BlockSpec((tb, D_pad), lambda i: (i, 0))]
    in_specs += [resident_spec(a) for a in packed]

    # Explicit VMEM budget: 2x-buffered x/out tiles + 2x weights + activations.
    vmem_bytes = (2 * tb * D_pad * (2 + 4)
                  + 2 * sum(int(a.size) * a.dtype.itemsize for a in packed)
                  + 6 * tb * 128 * 4
                  + (4 << 20))
    vmem_bytes = int(min(max(vmem_bytes, 16 << 20), 48 << 20))

    out = pl.pallas_call(
        _autoencoder_kernel,
        out_shape=jax.ShapeDtypeStruct((B_pad, D_pad), jnp.float32),
        grid=grid,
        in_specs=in_specs,
        out_specs=pl.BlockSpec((tb, D_pad), lambda i: (i, 0)),
        compiler_params=pltpu.CompilerParams(
            dimension_semantics=("parallel",),
            vmem_limit_bytes=vmem_bytes),
    )(x_in, *packed)

    if (B_pad != B) or (D_pad != D):
        out = out[:B, :D]
    return out


# ------------------------- parameter construction -------------------------

def make_params(key, input_dim, encoding_dim):
    """Mirrors the PyTorch module's init.

    Weights: kaiming_normal_(mode='fan_in', nonlinearity='relu')
             -> std = sqrt(2 / fan_in), fan_in = in_features.
    Biases : PyTorch Linear default uniform(-1/sqrt(fan_in), 1/sqrt(fan_in)).
    Weights are stored pre-transposed as (in_features, out_features) f32.
    """
    dims = [(input_dim, 128), (128, 64), (64, encoding_dim),
            (encoding_dim, 64), (64, 128), (128, input_dim)]
    ks = jax.random.split(key, 2 * len(dims))
    params = {}
    for li, (fan_in, fan_out) in enumerate(dims):
        kw, kb = ks[2 * li], ks[2 * li + 1]
        std = (2.0 / fan_in) ** 0.5
        w = std * jax.random.normal(kw, (fan_out, fan_in), jnp.float32)  # (out, in)
        bound = 1.0 / (fan_in ** 0.5)
        b = jax.random.uniform(kb, (fan_out,), jnp.float32, -bound, bound)
        params[f"w{li + 1}"] = w.T            # (in, out) for row-major matmul
        params[f"b{li + 1}"] = b[None, :]     # (1, out)
    return params


# ------------------------- pure-JAX reference -------------------------

def autoencoder_reference(x, p):
    """Reference with the same bf16-operand / f32-accumulate numerics."""
    def lin(h, wgt, b):
        return jnp.dot(h.astype(jnp.bfloat16), wgt.astype(jnp.bfloat16),
                       preferred_element_type=jnp.float32) + b
    h = jnp.maximum(lin(x, p["w1"], p["b1"]), 0.0)
    h = jnp.maximum(lin(h, p["w2"], p["b2"]), 0.0)
    h = lin(h, p["w3"], p["b3"])
    h = jnp.maximum(lin(h, p["w4"], p["b4"]), 0.0)
    h = jnp.maximum(lin(h, p["w5"], p["b5"]), 0.0)
    h = lin(h, p["w6"], p["b6"])
    return jax.nn.sigmoid(h)


# ------------------------------- main -------------------------------

if __name__ == "__main__":
    batch, input_dim, encoding_dim = 8, 16, 8

    key = jax.random.PRNGKey(0)
    k_x, k_p = jax.random.split(key)
    x = jax.random.normal(k_x, (batch, input_dim), jnp.float32)
    params = make_params(k_p, input_dim, encoding_dim)

    out = autoencoder_forward(x, params)
    out = jax.block_until_ready(out)

    ref = autoencoder_reference(x, params)
    assert out.shape == (batch, input_dim)
    assert bool(jnp.allclose(out, ref, atol=5e-3, rtol=5e-3)), "mismatch vs reference"

    print("KERNEL_OK")
</pallas_src>

<mosaic_0001>
module attributes {stable_mosaic.version = 11 : i64} {
  func.func @_autoencoder_kernel(%arg0: i32, %arg1: memref<8x128xbf16, #tpu.memory_space<vmem>>, %arg2: memref<128x128xbf16, #tpu.memory_space<vmem>>, %arg3: memref<1x128xf32, #tpu.memory_space<vmem>>, %arg4: memref<128x64xbf16, #tpu.memory_space<vmem>>, %arg5: memref<1x64xf32, #tpu.memory_space<vmem>>, %arg6: memref<64x8xbf16, #tpu.memory_space<vmem>>, %arg7: memref<1x8xf32, #tpu.memory_space<vmem>>, %arg8: memref<8x64xbf16, #tpu.memory_space<vmem>>, %arg9: memref<1x64xf32, #tpu.memory_space<vmem>>, %arg10: memref<64x128xbf16, #tpu.memory_space<vmem>>, %arg11: memref<1x128xf32, #tpu.memory_space<vmem>>, %arg12: memref<128x128xbf16, #tpu.memory_space<vmem>>, %arg13: memref<1x128xf32, #tpu.memory_space<vmem>>, %arg14: memref<8x128xf32, #tpu.memory_space<vmem>>) attributes {dimension_semantics = [#tpu.dimension_semantics<parallel>], iteration_bounds = array<i64: 1>, scalar_prefetch = 0 : i64, scratch_operands = 0 : i64, tpu.core_type = #tpu.core_type<tc>, window_params = [{transform_indices = @transform_0, window_bounds = array<i64: 8, 128>}, {pipeline_mode = #tpu.pipeline_mode<synchronous>, transform_indices = @transform_1, window_bounds = array<i64: 128, 128>}, {pipeline_mode = #tpu.pipeline_mode<synchronous>, transform_indices = @transform_2, window_bounds = array<i64: 1, 128>}, {pipeline_mode = #tpu.pipeline_mode<synchronous>, transform_indices = @transform_3, window_bounds = array<i64: 128, 64>}, {pipeline_mode = #tpu.pipeline_mode<synchronous>, transform_indices = @transform_4, window_bounds = array<i64: 1, 64>}, {pipeline_mode = #tpu.pipeline_mode<synchronous>, transform_indices = @transform_5, window_bounds = array<i64: 64, 8>}, {pipeline_mode = #tpu.pipeline_mode<synchronous>, transform_indices = @transform_6, window_bounds = array<i64: 1, 8>}, {pipeline_mode = #tpu.pipeline_mode<synchronous>, transform_indices = @transform_7, window_bounds = array<i64: 8, 64>}, {pipeline_mode = #tpu.pipeline_mode<synchronous>, transform_indices = @transform_8, window_bounds = array<i64: 1, 64>}, {pipeline_mode = #tpu.pipeline_mode<synchronous>, transform_indices = @transform_9, window_bounds = array<i64: 64, 128>}, {pipeline_mode = #tpu.pipeline_mode<synchronous>, transform_indices = @transform_10, window_bounds = array<i64: 1, 128>}, {pipeline_mode = #tpu.pipeline_mode<synchronous>, transform_indices = @transform_11, window_bounds = array<i64: 128, 128>}, {pipeline_mode = #tpu.pipeline_mode<synchronous>, transform_indices = @transform_12, window_bounds = array<i64: 1, 128>}, {transform_indices = @transform_13, window_bounds = array<i64: 8, 128>}]} {
    %c0 = arith.constant 0 : index
    %c0_0 = arith.constant 0 : index
    %0 = vector.load %arg1[%c0, %c0_0] : memref<8x128xbf16, #tpu.memory_space<vmem>>, vector<8x128xbf16>
    %c0_1 = arith.constant 0 : index
    %c0_2 = arith.constant 0 : index
    %1 = vector.load %arg2[%c0_1, %c0_2] : memref<128x128xbf16, #tpu.memory_space<vmem>>, vector<128x128xbf16>
    %cst = arith.constant dense<0.000000e+00> : vector<8x128xf32>
    %2 = tpu.matmul %0, %1, %cst {dimension_numbers = #tpu.dot_dimension_numbers<[1], [0], [0], [1], [0, 0, 1, 1], [], []>} : vector<8x128xbf16>, vector<128x128xbf16>, vector<8x128xf32> -> vector<8x128xf32>
    %c0_3 = arith.constant 0 : index
    %c0_4 = arith.constant 0 : index
    %3 = vector.load %arg3[%c0_3, %c0_4] : memref<1x128xf32, #tpu.memory_space<vmem>>, vector<1x128xf32>
    %4 = vector.broadcast %3 : vector<1x128xf32> to vector<8x128xf32>
    %5 = arith.addf %2, %4 : vector<8x128xf32>
    %cst_5 = arith.constant 0.000000e+00 : f32
    %6 = vector.broadcast %cst_5 : f32 to vector<8x128xf32>
    %7 = arith.maximumf %5, %6 : vector<8x128xf32>
    %8 = arith.truncf %7 : vector<8x128xf32> to vector<8x128xbf16>
    %c0_6 = arith.constant 0 : index
    %c0_7 = arith.constant 0 : index
    %9 = vector.load %arg4[%c0_6, %c0_7] : memref<128x64xbf16, #tpu.memory_space<vmem>>, vector<128x64xbf16>
    %cst_8 = arith.constant dense<0.000000e+00> : vector<8x64xf32>
    %10 = tpu.matmul %8, %9, %cst_8 {dimension_numbers = #tpu.dot_dimension_numbers<[1], [0], [0], [1], [0, 0, 1, 1], [], []>} : vector<8x128xbf16>, vector<128x64xbf16>, vector<8x64xf32> -> vector<8x64xf32>
    %c0_9 = arith.constant 0 : index
    %c0_10 = arith.constant 0 : index
    %11 = vector.load %arg5[%c0_9, %c0_10] : memref<1x64xf32, #tpu.memory_space<vmem>>, vector<1x64xf32>
    %12 = vector.broadcast %11 : vector<1x64xf32> to vector<8x64xf32>
    %13 = arith.addf %10, %12 : vector<8x64xf32>
    %cst_11 = arith.constant 0.000000e+00 : f32
    %14 = vector.broadcast %cst_11 : f32 to vector<8x64xf32>
    %15 = arith.maximumf %13, %14 : vector<8x64xf32>
    %16 = arith.truncf %15 : vector<8x64xf32> to vector<8x64xbf16>
    %c0_12 = arith.constant 0 : index
    %c0_13 = arith.constant 0 : index
    %17 = vector.load %arg6[%c0_12, %c0_13] : memref<64x8xbf16, #tpu.memory_space<vmem>>, vector<64x8xbf16>
    %cst_14 = arith.constant dense<0.000000e+00> : vector<8x8xf32>
    %18 = tpu.matmul %16, %17, %cst_14 {dimension_numbers = #tpu.dot_dimension_numbers<[1], [0], [0], [1], [0, 0, 1, 1], [], []>} : vector<8x64xbf16>, vector<64x8xbf16>, vector<8x8xf32> -> vector<8x8xf32>
    %c0_15 = arith.constant 0 : index
    %c0_16 = arith.constant 0 : index
    %19 = vector.load %arg7[%c0_15, %c0_16] : memref<1x8xf32, #tpu.memory_space<vmem>>, vector<1x8xf32>
    %20 = vector.broadcast %19 : vector<1x8xf32> to vector<8x8xf32>
    %21 = arith.addf %18, %20 : vector<8x8xf32>
    %22 = arith.truncf %21 : vector<8x8xf32> to vector<8x8xbf16>
    %c0_17 = arith.constant 0 : index
    %c0_18 = arith.constant 0 : index
    %23 = vector.load %arg8[%c0_17, %c0_18] : memref<8x64xbf16, #tpu.memory_space<vmem>>, vector<8x64xbf16>
    %cst_19 = arith.constant dense<0.000000e+00> : vector<8x64xf32>
    %24 = tpu.matmul %22, %23, %cst_19 {dimension_numbers = #tpu.dot_dimension_numbers<[1], [0], [0], [1], [0, 0, 1, 1], [], []>} : vector<8x8xbf16>, vector<8x64xbf16>, vector<8x64xf32> -> vector<8x64xf32>
    %c0_20 = arith.constant 0 : index
    %c0_21 = arith.constant 0 : index
    %25 = vector.load %arg9[%c0_20, %c0_21] : memref<1x64xf32, #tpu.memory_space<vmem>>, vector<1x64xf32>
    %26 = vector.broadcast %25 : vector<1x64xf32> to vector<8x64xf32>
    %27 = arith.addf %24, %26 : vector<8x64xf32>
    %cst_22 = arith.constant 0.000000e+00 : f32
    %28 = vector.broadcast %cst_22 : f32 to vector<8x64xf32>
    %29 = arith.maximumf %27, %28 : vector<8x64xf32>
    %30 = arith.truncf %29 : vector<8x64xf32> to vector<8x64xbf16>
    %c0_23 = arith.constant 0 : index
    %c0_24 = arith.constant 0 : index
    %31 = vector.load %arg10[%c0_23, %c0_24] : memref<64x128xbf16, #tpu.memory_space<vmem>>, vector<64x128xbf16>
    %cst_25 = arith.constant dense<0.000000e+00> : vector<8x128xf32>
    %32 = tpu.matmul %30, %31, %cst_25 {dimension_numbers = #tpu.dot_dimension_numbers<[1], [0], [0], [1], [0, 0, 1, 1], [], []>} : vector<8x64xbf16>, vector<64x128xbf16>, vector<8x128xf32> -> vector<8x128xf32>
    %c0_26 = arith.constant 0 : index
    %c0_27 = arith.constant 0 : index
    %33 = vector.load %arg11[%c0_26, %c0_27] : memref<1x128xf32, #tpu.memory_space<vmem>>, vector<1x128xf32>
    %34 = vector.broadcast %33 : vector<1x128xf32> to vector<8x128xf32>
    %35 = arith.addf %32, %34 : vector<8x128xf32>
    %cst_28 = arith.constant 0.000000e+00 : f32
    %36 = vector.broadcast %cst_28 : f32 to vector<8x128xf32>
    %37 = arith.maximumf %35, %36 : vector<8x128xf32>
    %38 = arith.truncf %37 : vector<8x128xf32> to vector<8x128xbf16>
    %c0_29 = arith.constant 0 : index
    %c0_30 = arith.constant 0 : index
    %39 = vector.load %arg12[%c0_29, %c0_30] : memref<128x128xbf16, #tpu.memory_space<vmem>>, vector<128x128xbf16>
    %cst_31 = arith.constant dense<0.000000e+00> : vector<8x128xf32>
    %40 = tpu.matmul %38, %39, %cst_31 {dimension_numbers = #tpu.dot_dimension_numbers<[1], [0], [0], [1], [0, 0, 1, 1], [], []>} : vector<8x128xbf16>, vector<128x128xbf16>, vector<8x128xf32> -> vector<8x128xf32>
    %c0_32 = arith.constant 0 : index
    %c0_33 = arith.constant 0 : index
    %41 = vector.load %arg13[%c0_32, %c0_33] : memref<1x128xf32, #tpu.memory_space<vmem>>, vector<1x128xf32>
    %42 = vector.broadcast %41 : vector<1x128xf32> to vector<8x128xf32>
    %43 = arith.addf %40, %42 : vector<8x128xf32>
    %44 = arith.negf %43 : vector<8x128xf32>
    %45 = math.exp %44 : vector<8x128xf32>
    %cst_34 = arith.constant 1.000000e+00 : f32
    %46 = vector.broadcast %cst_34 : f32 to vector<8x128xf32>
    %47 = arith.addf %46, %45 : vector<8x128xf32>
    %48 = arith.divf %46, %47 : vector<8x128xf32>
    %c0_35 = arith.constant 0 : index
    %c0_36 = arith.constant 0 : index
    %49 = vector.load %arg14[%c0_35, %c0_36] : memref<8x128xf32, #tpu.memory_space<vmem>>, vector<8x128xf32>
    tpu.vector_store %arg14[%c0_35, %c0_36], %48 {strides = array<i32>} : memref<8x128xf32, #tpu.memory_space<vmem>>, vector<8x128xf32>,
    return
  }
  func.func @transform_0(%arg0: i32) -> (i32, i32) {
    %c0_i32 = arith.constant 0 : i32
    %c0_i32_0 = arith.constant 0 : i32
    return %arg0, %c0_i32 : i32, i32
  }
  func.func @transform_1(%arg0: i32) -> (i32, i32) {
    %c0_i32 = arith.constant 0 : i32
    %c0_i32_0 = arith.constant 0 : i32
    %c0_i32_1 = arith.constant 0 : i32
    return %c0_i32, %c0_i32_0 : i32, i32
  }
  func.func @transform_2(%arg0: i32) -> (i32, i32) {
    %c0_i32 = arith.constant 0 : i32
    %c0_i32_0 = arith.constant 0 : i32
    %c0_i32_1 = arith.constant 0 : i32
    return %c0_i32, %c0_i32_0 : i32, i32
  }
  func.func @transform_3(%arg0: i32) -> (i32, i32) {
    %c0_i32 = arith.constant 0 : i32
    %c0_i32_0 = arith.constant 0 : i32
    %c0_i32_1 = arith.constant 0 : i32
    return %c0_i32, %c0_i32_0 : i32, i32
  }
  func.func @transform_4(%arg0: i32) -> (i32, i32) {
    %c0_i32 = arith.constant 0 : i32
    %c0_i32_0 = arith.constant 0 : i32
    %c0_i32_1 = arith.constant 0 : i32
    return %c0_i32, %c0_i32_0 : i32, i32
  }
  func.func @transform_5(%arg0: i32) -> (i32, i32) {
    %c0_i32 = arith.constant 0 : i32
    %c0_i32_0 = arith.constant 0 : i32
    %c0_i32_1 = arith.constant 0 : i32
    return %c0_i32, %c0_i32_0 : i32, i32
  }
  func.func @transform_6(%arg0: i32) -> (i32, i32) {
    %c0_i32 = arith.constant 0 : i32
    %c0_i32_0 = arith.constant 0 : i32
    %c0_i32_1 = arith.constant 0 : i32
    return %c0_i32, %c0_i32_0 : i32, i32
  }
  func.func @transform_7(%arg0: i32) -> (i32, i32) {
    %c0_i32 = arith.constant 0 : i32
    %c0_i32_0 = arith.constant 0 : i32
    %c0_i32_1 = arith.constant 0 : i32
    return %c0_i32, %c0_i32_0 : i32, i32
  }
  func.func @transform_8(%arg0: i32) -> (i32, i32) {
    %c0_i32 = arith.constant 0 : i32
    %c0_i32_0 = arith.constant 0 : i32
    %c0_i32_1 = arith.constant 0 : i32
    return %c0_i32, %c0_i32_0 : i32, i32
  }
  func.func @transform_9(%arg0: i32) -> (i32, i32) {
    %c0_i32 = arith.constant 0 : i32
    %c0_i32_0 = arith.constant 0 : i32
    %c0_i32_1 = arith.constant 0 : i32
    return %c0_i32, %c0_i32_0 : i32, i32
  }
  func.func @transform_10(%arg0: i32) -> (i32, i32) {
    %c0_i32 = arith.constant 0 : i32
    %c0_i32_0 = arith.constant 0 : i32
    %c0_i32_1 = arith.constant 0 : i32
    return %c0_i32, %c0_i32_0 : i32, i32
  }
  func.func @transform_11(%arg0: i32) -> (i32, i32) {
    %c0_i32 = arith.constant 0 : i32
    %c0_i32_0 = arith.constant 0 : i32
    %c0_i32_1 = arith.constant 0 : i32
    return %c0_i32, %c0_i32_0 : i32, i32
  }
  func.func @transform_12(%arg0: i32) -> (i32, i32) {
    %c0_i32 = arith.constant 0 : i32
    %c0_i32_0 = arith.constant 0 : i32
    %c0_i32_1 = arith.constant 0 : i32
    return %c0_i32, %c0_i32_0 : i32, i32
  }
  func.func @transform_13(%arg0: i32) -> (i32, i32) {
    %c0_i32 = arith.constant 0 : i32
    %c0_i32_0 = arith.constant 0 : i32
    return %arg0, %c0_i32 : i32, i32
  }
}

</mosaic_0001>

<llo_original>
// kernel: tpu_custom_call.1
$region0: #{tpu_custom_call.1}
  #allocation0 [shape = 'u32[]', space=smem, size = 0x4, offset = 0x4, fixed_abs, tag = 'smem constant byte address 0x4 - core index']
  #allocation1 [shape = 'u32[144,128]{1,0:T(1,128)}', space=vmem, size = 0x12000, scoped, tag = 'internal scratch']
  %s0 = inlined_call_operand.hbm [shape: bf16[8,128], index: 0, kind: input, shape index: {}]
  %s1 = inlined_call_operand.vmem [shape: bf16[128,128], index: 1, kind: input, shape index: {}]
  %s2 = inlined_call_operand.vmem [shape: f32[1,128], index: 2, kind: input, shape index: {}]
  %s3 = inlined_call_operand.vmem [shape: bf16[128,64], index: 3, kind: input, shape index: {}]
  %s4 = inlined_call_operand.vmem [shape: f32[1,64], index: 4, kind: input, shape index: {}]
  %s5 = inlined_call_operand.vmem [shape: bf16[64,8], index: 5, kind: input, shape index: {}]
  %s6 = inlined_call_operand.hbm [shape: f32[1,8], index: 6, kind: input, shape index: {}]
  %s7 = inlined_call_operand.hbm [shape: bf16[8,64], index: 7, kind: input, shape index: {}]
  %s8 = inlined_call_operand.hbm [shape: f32[1,64], index: 8, kind: input, shape index: {}]
  %s9 = inlined_call_operand.vmem [shape: bf16[64,128], index: 9, kind: input, shape index: {}]
  %s10 = inlined_call_operand.vmem [shape: f32[1,128], index: 10, kind: input, shape index: {}]
  %s11 = inlined_call_operand.vmem [shape: bf16[128,128], index: 11, kind: input, shape index: {}]
  %s12 = inlined_call_operand.vmem [shape: f32[1,128], index: 12, kind: input, shape index: {}]
  %s13 = inlined_call_operand.hbm [shape: f32[8,128], index: 13, kind: output, shape index: {}]
  %s14 = sld [smem:[#allocation0]]
  $region78: #{tpu_custom_call.1} parent=0
    _
  %s16 = ssub.s32 1, %s14
  %s17 = scalar_select 0, %s16, %s14
  $region1: #{tpu_custom_call.1} parent=0
    #allocation2 [shape = 'u8[2048]{0}', space=vmem, size = 0x800, scoped, tag = 'input window, operand 0, single buffered']
    #allocation3 [shape = 's32[1]{0}', space=sflag, size = 0x4, scoped, tag = 'scoped memory for tpu_custom_call.1']
    #allocation4 [shape = 's32[1]{0}', space=sflag, size = 0x4, scoped, tag = 'scoped memory for tpu_custom_call.1']
    #allocation5 [shape = 'u8[512]{0}', space=vmem, size = 0x400, scoped, tag = 'input window, operand 6, single buffered']
    #allocation6 [shape = 's32[1]{0}', space=sflag, size = 0x4, scoped, tag = 'scoped memory for tpu_custom_call.1']
    #allocation7 [shape = 'u8[2048]{0}', space=vmem, size = 0x800, scoped, tag = 'input window, operand 7, single buffered']
    #allocation8 [shape = 'u8[512]{0}', space=vmem, size = 0x400, scoped, tag = 'input window, operand 8, single buffered']
    #allocation9 [shape = 's32[1]{0}', space=sflag, size = 0x4, scoped, tag = 'scoped memory for tpu_custom_call.1']
    #allocation10 [shape = 'u8[4096]{0}', space=vmem, size = 0x1000, scoped, tag = 'output window, operand 0, single buffered']
    %18 = vsyncpa [#allocation3], 0
    %19 = vsyncpa [#allocation6], 0
    %20 = vsyncpa [#allocation9], 0
    %21 = vsyncpa [#allocation4], 0
    // Predicated region
    $region2: #{tpu_custom_call.1} parent=1 // pred_check
      _
    $region3: #{tpu_custom_call.1} parent=1 // pred_check_branch
      %23 = sbr.rel (0) target = $region5
    $region4: #{tpu_custom_call.1} parent=1 // pred_region
      %s25 = ssub.s32 64, 64
      %26 = vsyncadd [#allocation3], %s25
      %s28 = sshll.u32 [#allocation2], 4
      %s29 = int_to_ptr.vmem [resolvable:$true] %s28
      %31 = dma.hbm_to_vmem [thread:$0]  %s0, 64, %s29, [#allocation3]
    $region5: #{tpu_custom_call.1} parent=1 // pred_fallthru
      _
    // Predicated region
    $region6: #{tpu_custom_call.1} parent=1 // pred_check
      _
    $region7: #{tpu_custom_call.1} parent=1 // pred_check_branch
      %33 = sbr.rel (0) target = $region9
    $region8: #{tpu_custom_call.1} parent=1 // pred_region
      _
    $region9: #{tpu_custom_call.1} parent=1 // pred_fallthru
      _
    // Predicated region
    $region10: #{tpu_custom_call.1} parent=1 // pred_check
      _
    $region11: #{tpu_custom_call.1} parent=1 // pred_check_branch
      %35 = sbr.rel (0) target = $region13
    $region12: #{tpu_custom_call.1} parent=1 // pred_region
      _
    $region13: #{tpu_custom_call.1} parent=1 // pred_fallthru
      _
    // Predicated region
    $region14: #{tpu_custom_call.1} parent=1 // pred_check
      _
    $region15: #{tpu_custom_call.1} parent=1 // pred_check_branch
      %37 = sbr.rel (0) target = $region17
    $region16: #{tpu_custom_call.1} parent=1 // pred_region
      _
    $region17: #{tpu_custom_call.1} parent=1 // pred_fallthru
      _
    // Predicated region
    $region18: #{tpu_custom_call.1} parent=1 // pred_check
      _
    $region19: #{tpu_custom_call.1} parent=1 // pred_check_branch
      %39 = sbr.rel (0) target = $region21
    $region20: #{tpu_custom_call.1} parent=1 // pred_region
      _
    $region21: #{tpu_custom_call.1} parent=1 // pred_fallthru
      _
    // Predicated region
    $region22: #{tpu_custom_call.1} parent=1 // pred_check
      _
    $region23: #{tpu_custom_call.1} parent=1 // pred_check_branch
      %41 = sbr.rel (0) target = $region25
    $region24: #{tpu_custom_call.1} parent=1 // pred_region
      _
    $region25: #{tpu_custom_call.1} parent=1 // pred_fallthru
      _
    // Predicated region
    $region26: #{tpu_custom_call.1} parent=1 // pred_check
      _
    $region27: #{tpu_custom_call.1} parent=1 // pred_check_branch
      %43 = sbr.rel (0) target = $region29
    $region28: #{tpu_custom_call.1} parent=1 // pred_region
      %s45 = ssub.s32 16, 16
      %46 = vsyncadd [#allocation6], %s45
      %s48 = sshll.u32 [#allocation5], 4
      %s49 = int_to_ptr.vmem [resolvable:$true] %s48
      %51 = dma.hbm_to_vmem [thread:$0]  %s6, 16, %s49, [#allocation6]
    $region29: #{tpu_custom_call.1} parent=1 // pred_fallthru
      _
    // Predicated region
    $region30: #{tpu_custom_call.1} parent=1 // pred_check
      _
    $region31: #{tpu_custom_call.1} parent=1 // pred_check_branch
      %53 = sbr.rel (0) target = $region33
    $region32: #{tpu_custom_call.1} parent=1 // pred_region
      %s55 = ssub.s32 64, 64
      %56 = vsyncadd [#allocation6], %s55
      %s58 = sshll.u32 [#allocation7], 4
      %s59 = int_to_ptr.vmem [resolvable:$true] %s58
      %61 = dma.hbm_to_vmem [thread:$0]  %s7, 64, %s59, [#allocation6]
    $region33: #{tpu_custom_call.1} parent=1 // pred_fallthru
      _
    // Predicated region
    $region34: #{tpu_custom_call.1} parent=1 // pred_check
      _
    $region35: #{tpu_custom_call.1} parent=1 // pred_check_branch
      %63 = sbr.rel (0) target = $region37
    $region36: #{tpu_custom_call.1} parent=1 // pred_region
      %s65 = ssub.s32 16, 16
      %66 = vsyncadd [#allocation9], %s65
      %s68 = sshll.u32 [#allocation8], 4
      %s69 = int_to_ptr.vmem [resolvable:$true] %s68
      %71 = dma.hbm_to_vmem [thread:$0]  %s8, 16, %s69, [#allocation9]
    $region37: #{tpu_custom_call.1} parent=1 // pred_fallthru
      _
    // Predicated region
    $region38: #{tpu_custom_call.1} parent=1 // pred_check
      _
    $region39: #{tpu_custom_call.1} parent=1 // pred_check_branch
      %73 = sbr.rel (0) target = $region41
    $region40: #{tpu_custom_call.1} parent=1 // pred_region
      _
    $region41: #{tpu_custom_call.1} parent=1 // pred_fallthru
      _
    // Predicated region
    $region42: #{tpu_custom_call.1} parent=1 // pred_check
      _
    $region43: #{tpu_custom_call.1} parent=1 // pred_check_branch
      %75 = sbr.rel (0) target = $region45
    $region44: #{tpu_custom_call.1} parent=1 // pred_region
      _
    $region45: #{tpu_custom_call.1} parent=1 // pred_fallthru
      _
    // Predicated region
    $region46: #{tpu_custom_call.1} parent=1 // pred_check
      _
    $region47: #{tpu_custom_call.1} parent=1 // pred_check_branch
      %77 = sbr.rel (0) target = $region49
    $region48: #{tpu_custom_call.1} parent=1 // pred_region
      _
    $region49: #{tpu_custom_call.1} parent=1 // pred_fallthru
      _
    // Predicated region
    $region50: #{tpu_custom_call.1} parent=1 // pred_check
      _
    $region51: #{tpu_custom_call.1} parent=1 // pred_check_branch
      %79 = sbr.rel (0) target = $region53
    $region52: #{tpu_custom_call.1} parent=1 // pred_region
      _
    $region53: #{tpu_custom_call.1} parent=1 // pred_fallthru
      _
    // Predicated region
    $region54: #{tpu_custom_call.1} parent=1 // pred_check
      _
    $region55: #{tpu_custom_call.1} parent=1 // pred_check_branch
      %81 = sbr.rel (0) target = $region57
    $region56: #{tpu_custom_call.1} parent=1 // pred_region
      %82 = dma.done [#allocation3], 64
    $region57: #{tpu_custom_call.1} parent=1 // pred_fallthru
      _
    // Predicated region
    $region58: #{tpu_custom_call.1} parent=1 // pred_check
      _
    $region59: #{tpu_custom_call.1} parent=1 // pred_check_branch
      %84 = sbr.rel (0) target = $region61
    $region60: #{tpu_custom_call.1} parent=1 // pred_region
      %85 = dma.done [#allocation6], 16
    $region61: #{tpu_custom_call.1} parent=1 // pred_fallthru
      _
    // Predicated region
    $region62: #{tpu_custom_call.1} parent=1 // pred_check
      _
    $region63: #{tpu_custom_call.1} parent=1 // pred_check_branch
      %87 = sbr.rel (0) target = $region65
    $region64: #{tpu_custom_call.1} parent=1 // pred_region
      %88 = dma.done [#allocation6], 64
    $region65: #{tpu_custom_call.1} parent=1 // pred_fallthru
      _
    // Predicated region
    $region66: #{tpu_custom_call.1} parent=1 // pred_check
      _
    $region67: #{tpu_custom_call.1} parent=1 // pred_check_branch
      %90 = sbr.rel (0) target = $region69
    $region68: #{tpu_custom_call.1} parent=1 // pred_region
      %91 = dma.done [#allocation9], 16
    $region69: #{tpu_custom_call.1} parent=1 // pred_fallthru
      _
    %v93 = vld [vmem:[#allocation2] sm:$0xf]
    %v94 = vld [vmem:[%s1] sm:$0xf]
    %v95 = vld [vmem:[%s1 + $0x4] sm:$0xf]
    %v96 = vld [vmem:[%s1 + $0x8] sm:$0xf]
    %v97 = vld [vmem:[%s1 + $0xc] sm:$0xf]
    %v98 = vld [vmem:[%s1 + $0x10] sm:$0xf]
    %v99 = vld [vmem:[%s1 + $0x14] sm:$0xf]
    %v100 = vld [vmem:[%s1 + $0x18] sm:$0xf]
    %v101 = vld [vmem:[%s1 + $0x1c] sm:$0xf]
    %v102 = vld [vmem:[%s1 + $0x20] sm:$0xf]
    %v103 = vld [vmem:[%s1 + $0x24] sm:$0xf]
    %v104 = vld [vmem:[%s1 + $0x28] sm:$0xf]
    %v105 = vld [vmem:[%s1 + $0x2c] sm:$0xf]
    %v106 = vld [vmem:[%s1 + $0x30] sm:$0xf]
    %v107 = vld [vmem:[%s1 + $0x34] sm:$0xf]
    %v108 = vld [vmem:[%s1 + $0x38] sm:$0xf]
    %v109 = vld [vmem:[%s1 + $0x3c] sm:$0xf]
    %v110 = vld [vmem:[%s2] sm:$0x1]
    %v112 = vlaneseq
    %v113 = vshrl.u32 %v112, 7
    %v114 = vsub.s32 0, %v113
    %v115 = vrot.slane %v110, %v114
    %v133 = vunpack.c.l.b16 %v94
    %v134 = vunpack.c.l.b16 %v95
    %v135 = vunpack.c.l.b16 %v96
    %v136 = vunpack.c.l.b16 %v97
    %v137 = vunpack.c.l.b16 %v98
    %v138 = vunpack.c.l.b16 %v99
    %v139 = vunpack.c.l.b16 %v100
    %v140 = vunpack.c.l.b16 %v101
    %v141 = vunpack.c.l.b16 %v102
    %v142 = vunpack.c.l.b16 %v103
    %v143 = vunpack.c.l.b16 %v104
    %v144 = vunpack.c.l.b16 %v105
    %v145 = vunpack.c.l.b16 %v106
    %v146 = vunpack.c.l.b16 %v107
    %v147 = vunpack.c.l.b16 %v108
    %v148 = vunpack.c.l.b16 %v109
    %v149 = vpack.c.b16 %v134, %v133
    %v150 = vpack.c.b16 %v136, %v135
    %v151 = vpack.c.b16 %v138, %v137
    %v152 = vpack.c.b16 %v140, %v139
    %v153 = vpack.c.b16 %v142, %v141
    %v154 = vpack.c.b16 %v144, %v143
    %v155 = vpack.c.b16 %v146, %v145
    %v156 = vpack.c.b16 %v148, %v147
    %165 = vmatprep.subr.bf16.mxu0 0
    %166 = vmatpush1.bf16.msra.mxu0 %v149
    %167 = vmatprep.subr.bf16.mxu0 0
    %168 = vmatpush1.bf16.msra.mxu0 %v150
    %169 = vmatprep.subr.bf16.mxu0 0
    %170 = vmatpush1.bf16.msra.mxu0 %v151
    %171 = vmatprep.subr.bf16.mxu0 0
    %172 = vmatpush1.bf16.msra.mxu0 %v152
    %173 = vmatprep.subr.bf16.mxu0 0
    %174 = vmatpush1.bf16.msra.mxu0 %v153
    %175 = vmatprep.subr.bf16.mxu0 0
    %176 = vmatpush1.bf16.msra.mxu0 %v154
    %177 = vmatprep.subr.bf16.mxu0 0
    %178 = vmatpush1.bf16.msra.mxu0 %v155
    %179 = vmatprep.subr.bf16.mxu0 0
    %180 = vmatpush1.bf16.msra.mxu0 %v156
    %181 = vmatprep.subr.bf16.mxu0 0
    %182 = vmatpush1.bf16.msra.mxu0 0
    %183 = vmatprep.subr.bf16.mxu0 0
    %184 = vmatpush1.bf16.msra.mxu0 0
    %185 = vmatprep.subr.bf16.mxu0 0
    %186 = vmatpush1.bf16.msra.mxu0 0
    %187 = vmatprep.subr.bf16.mxu0 0
    %188 = vmatpush1.bf16.msra.mxu0 0
    %189 = vmatprep.subr.bf16.mxu0 0
    %190 = vmatpush1.bf16.msra.mxu0 0
    %191 = vmatprep.subr.bf16.mxu0 0
    %192 = vmatpush1.bf16.msra.mxu0 0
    %193 = vmatprep.subr.bf16.mxu0 0
    %194 = vmatpush1.bf16.msra.mxu0 0
    %195 = vmatprep.subr.bf16.mxu0 0
    %196 = vmatpush1.bf16.msra.mxu0 0
    %197 = vmatprep.mubr.bf16.mxu0 0
    %198 = vmatmul.mubr.bf16.gmra.mrb[0].mxu0 %v93
    %v199 = vpop.f32.mrb[0].mxu0
    %v200 = vadd.f32 %v115, %v199
    %v201 = vpop.f32.mrb[0].mxu0
    %v202 = vpop.f32.mrb[0].mxu0
    %v203 = vpop.f32.mrb[0].mxu0
    %204 = vdwg.mxu0
    %v205 = vmax.f32 %v200, 0.0
    %v206 = vpack.c.bf16 %v205, %v205
    %v207 = vld [vmem:[%s3] sm:$0xf]
    %v208 = vld [vmem:[%s3 + $0x4] sm:$0xf]
    %v209 = vld [vmem:[%s3 + $0x8] sm:$0xf]
    %v210 = vld [vmem:[%s3 + $0xc] sm:$0xf]
    %v211 = vld [vmem:[%s3 + $0x10] sm:$0xf]
    %v212 = vld [vmem:[%s3 + $0x14] sm:$0xf]
    %v213 = vld [vmem:[%s3 + $0x18] sm:$0xf]
    %v214 = vld [vmem:[%s3 + $0x1c] sm:$0xf]
    %v215 = vld [vmem:[%s3 + $0x20] sm:$0xf]
    %v216 = vld [vmem:[%s3 + $0x24] sm:$0xf]
    %v217 = vld [vmem:[%s3 + $0x28] sm:$0xf]
    %v218 = vld [vmem:[%s3 + $0x2c] sm:$0xf]
    %v219 = vld [vmem:[%s3 + $0x30] sm:$0xf]
    %v220 = vld [vmem:[%s3 + $0x34] sm:$0xf]
    %v221 = vld [vmem:[%s3 + $0x38] sm:$0xf]
    %v222 = vld [vmem:[%s3 + $0x3c] sm:$0xf]
    %v223 = vld [vmem:[%s4] sm:$0x1]
    %v225 = vlaneseq
    %v226 = vshrl.u32 %v225, 7
    %v227 = vsub.s32 0, %v226
    %v228 = vrot.slane %v223, %v227
    %v246 = vunpack.c.l.b16 %v207
    %v247 = vunpack.c.l.b16 %v208
    %v248 = vunpack.c.l.b16 %v209
    %v249 = vunpack.c.l.b16 %v210
    %v250 = vunpack.c.l.b16 %v211
    %v251 = vunpack.c.l.b16 %v212
    %v252 = vunpack.c.l.b16 %v213
    %v253 = vunpack.c.l.b16 %v214
    %v254 = vunpack.c.l.b16 %v215
    %v255 = vunpack.c.l.b16 %v216
    %v256 = vunpack.c.l.b16 %v217
    %v257 = vunpack.c.l.b16 %v218
    %v258 = vunpack.c.l.b16 %v219
    %v259 = vunpack.c.l.b16 %v220
    %v260 = vunpack.c.l.b16 %v221
    %v261 = vunpack.c.l.b16 %v222
    %v262 = vpack.c.b16 %v247, %v246
    %v263 = vpack.c.b16 %v249, %v248
    %v264 = vpack.c.b16 %v251, %v250
    %v265 = vpack.c.b16 %v253, %v252
    %v266 = vpack.c.b16 %v255, %v254
    %v267 = vpack.c.b16 %v257, %v256
    %v268 = vpack.c.b16 %v259, %v258
    %v269 = vpack.c.b16 %v261, %v260
    %278 = vmatprep.subr.bf16.mxu0 0
    %279 = vmatpush1.bf16.msra.mxu0 %v262
    %280 = vmatprep.subr.bf16.mxu0 0
    %281 = vmatpush1.bf16.msra.mxu0 %v263
    %282 = vmatprep.subr.bf16.mxu0 0
    %283 = vmatpush1.bf16.msra.mxu0 %v264
    %284 = vmatprep.subr.bf16.mxu0 0
    %285 = vmatpush1.bf16.msra.mxu0 %v265
    %286 = vmatprep.subr.bf16.mxu0 0
    %287 = vmatpush1.bf16.msra.mxu0 %v266
    %288 = vmatprep.subr.bf16.mxu0 0
    %289 = vmatpush1.bf16.msra.mxu0 %v267
    %290 = vmatprep.subr.bf16.mxu0 0
    %291 = vmatpush1.bf16.msra.mxu0 %v268
    %292 = vmatprep.subr.bf16.mxu0 0
    %293 = vmatpush1.bf16.msra.mxu0 %v269
    %294 = vmatprep.subr.bf16.mxu0 0
    %295 = vmatpush1.bf16.msra.mxu0 0
    %296 = vmatprep.subr.bf16.mxu0 0
    %297 = vmatpush1.bf16.msra.mxu0 0
    %298 = vmatprep.subr.bf16.mxu0 0
    %299 = vmatpush1.bf16.msra.mxu0 0
    %300 = vmatprep.subr.bf16.mxu0 0
    %301 = vmatpush1.bf16.msra.mxu0 0
    %302 = vmatprep.subr.bf16.mxu0 0
    %303 = vmatpush1.bf16.msra.mxu0 0
    %304 = vmatprep.subr.bf16.mxu0 0
    %305 = vmatpush1.bf16.msra.mxu0 0
    %306 = vmatprep.subr.bf16.mxu0 0
    %307 = vmatpush1.bf16.msra.mxu0 0
    %308 = vmatprep.subr.bf16.mxu0 0
    %309 = vmatpush1.bf16.msra.mxu0 0
    %310 = vmatprep.mubr.bf16.mxu0 0
    %311 = vmatmul.mubr.bf16.gmra.mrb[0].mxu0 %v206
    %v312 = vpop.f32.mrb[0].mxu0
    %v313 = vadd.f32 %v228, %v312
    %v314 = vpop.f32.mrb[0].mxu0
    %v315 = vpop.f32.mrb[0].mxu0
    %v316 = vpop.f32.mrb[0].mxu0
    %317 = vdwg.mxu0
    %v318 = vmax.f32 %v313, 0.0
    %v319 = vpack.c.bf16 %v318, %v318
    %v320 = vld [vmem:[%s5] sm:$0xf]
    %v321 = vld [vmem:[%s5 + $0x4] sm:$0xf]
    %v322 = vld [vmem:[%s5 + $0x8] sm:$0xf]
    %v323 = vld [vmem:[%s5 + $0xc] sm:$0xf]
    %v324 = vld [vmem:[%s5 + $0x10] sm:$0xf]
    %v325 = vld [vmem:[%s5 + $0x14] sm:$0xf]
    %v326 = vld [vmem:[%s5 + $0x18] sm:$0xf]
    %v327 = vld [vmem:[%s5 + $0x1c] sm:$0xf]
    %v328 = vld [vmem:[#allocation5] sm:$0x1]
    %v330 = vlaneseq
    %v331 = vshrl.u32 %v330, 7
    %v332 = vsub.s32 0, %v331
    %v333 = vrot.slane %v328, %v332
    %v343 = vunpack.c.l.b16 %v320
    %v344 = vunpack.c.l.b16 %v321
    %v345 = vunpack.c.l.b16 %v322
    %v346 = vunpack.c.l.b16 %v323
    %v347 = vunpack.c.l.b16 %v324
    %v348 = vunpack.c.l.b16 %v325
    %v349 = vunpack.c.l.b16 %v326
    %v350 = vunpack.c.l.b16 %v327
    %v351 = vpack.c.b16 %v344, %v343
    %v352 = vpack.c.b16 %v346, %v345
    %v353 = vpack.c.b16 %v348, %v347
    %v354 = vpack.c.b16 %v350, %v349
    %vm359 = vcmask 523264
    %v361 = vsel %vm359, %v319, 0
    %363 = vmatprep.subr.bf16.mxu0 0
    %364 = vmatpush1.bf16.msra.mxu0 %v351
    %365 = vmatprep.subr.bf16.mxu0 0
    %366 = vmatpush1.bf16.msra.mxu0 %v352
    %367 = vmatprep.subr.bf16.mxu0 0
    %368 = vmatpush1.bf16.msra.mxu0 %v353
    %369 = vmatprep.subr.bf16.mxu0 0
    %370 = vmatpush1.bf16.msra.mxu0 %v354
    %371 = vmatprep.subr.bf16.mxu0 0
    %372 = vmatpush1.bf16.msra.mxu0 0
    %373 = vmatprep.subr.bf16.mxu0 0
    %374 = vmatpush1.bf16.msra.mxu0 0
    %375 = vmatprep.subr.bf16.mxu0 0
    %376 = vmatpush1.bf16.msra.mxu0 0
    %377 = vmatprep.subr.bf16.mxu0 0
    %378 = vmatpush1.bf16.msra.mxu0 0
    %379 = vmatprep.subr.bf16.mxu0 0
    %380 = vmatpush1.bf16.msra.mxu0 0
    %381 = vmatprep.subr.bf16.mxu0 0
    %382 = vmatpush1.bf16.msra.mxu0 0
    %383 = vmatprep.subr.bf16.mxu0 0
    %384 = vmatpush1.bf16.msra.mxu0 0
    %385 = vmatprep.subr.bf16.mxu0 0
    %386 = vmatpush1.bf16.msra.mxu0 0
    %387 = vmatprep.subr.bf16.mxu0 0
    %388 = vmatpush1.bf16.msra.mxu0 0
    %389 = vmatprep.subr.bf16.mxu0 0
    %390 = vmatpush1.bf16.msra.mxu0 0
    %391 = vmatprep.subr.bf16.mxu0 0
    %392 = vmatpush1.bf16.msra.mxu0 0
    %393 = vmatprep.subr.bf16.mxu0 0
    %394 = vmatpush1.bf16.msra.mxu0 0
    %395 = vmatprep.mubr.bf16.mxu0 0
    %396 = vmatmul.mubr.bf16.gmra.mrb[0].mxu0 %v361
    %v397 = vpop.f32.mrb[0].mxu0
    %v398 = vadd.f32 %v333, %v397
    %v399 = vpop.f32.mrb[0].mxu0
    %v400 = vpop.f32.mrb[0].mxu0
    %v401 = vpop.f32.mrb[0].mxu0
    %402 = vdwg.mxu0
    %v403 = vpack.c.bf16 %v398, %v398
    %v404 = vld [vmem:[#allocation7] sm:$0xf]
    %v405 = vld [vmem:[#allocation8] sm:$0x1]
    %v407 = vlaneseq
    %v408 = vshrl.u32 %v407, 7
    %v409 = vsub.s32 0, %v408
    %v410 = vrot.slane %v405, %v409
    %vm412 = vcmask 64512
    %v414 = vsel %vm412, %v403, 0
    %vm416 = vcmask 1043456
    %v418 = vsel %vm416, %v404, 0
    %420 = vmatprep.subr.bf16.mxu0 0
    %421 = vmatpush1.bf16.msra.mxu0 %v418
    %422 = vmatprep.subr.bf16.mxu0 0
    %423 = vmatpush1.bf16.msra.mxu0 0
    %424 = vmatprep.subr.bf16.mxu0 0
    %425 = vmatpush1.bf16.msra.mxu0 0
    %426 = vmatprep.subr.bf16.mxu0 0
    %427 = vmatpush1.bf16.msra.mxu0 0
    %428 = vmatprep.subr.bf16.mxu0 0
    %429 = vmatpush1.bf16.msra.mxu0 0
    %430 = vmatprep.subr.bf16.mxu0 0
    %431 = vmatpush1.bf16.msra.mxu0 0
    %432 = vmatprep.subr.bf16.mxu0 0
    %433 = vmatpush1.bf16.msra.mxu0 0
    %434 = vmatprep.subr.bf16.mxu0 0
    %435 = vmatpush1.bf16.msra.mxu0 0
    %436 = vmatprep.subr.bf16.mxu0 0
    %437 = vmatpush1.bf16.msra.mxu0 0
    %438 = vmatprep.subr.bf16.mxu0 0
    %439 = vmatpush1.bf16.msra.mxu0 0
    %440 = vmatprep.subr.bf16.mxu0 0
    %441 = vmatpush1.bf16.msra.mxu0 0
    %442 = vmatprep.subr.bf16.mxu0 0
    %443 = vmatpush1.bf16.msra.mxu0 0
    %444 = vmatprep.subr.bf16.mxu0 0
    %445 = vmatpush1.bf16.msra.mxu0 0
    %446 = vmatprep.subr.bf16.mxu0 0
    %447 = vmatpush1.bf16.msra.mxu0 0
    %448 = vmatprep.subr.bf16.mxu0 0
    %449 = vmatpush1.bf16.msra.mxu0 0
    %450 = vmatprep.subr.bf16.mxu0 0
    %451 = vmatpush1.bf16.msra.mxu0 0
    %452 = vmatprep.mubr.bf16.mxu0 0
    %453 = vmatmul.mubr.bf16.gmra.mrb[0].mxu0 %v414
    %v454 = vpop.f32.mrb[0].mxu0
    %v455 = vadd.f32 %v410, %v454
    %v456 = vpop.f32.mrb[0].mxu0
    %v457 = vpop.f32.mrb[0].mxu0
    %v458 = vpop.f32.mrb[0].mxu0
    %459 = vdwg.mxu0
    %v460 = vmax.f32 %v455, 0.0
    %v461 = vpack.c.bf16 %v460, %v460
    %v462 = vld [vmem:[%s9] sm:$0xf]
    %v463 = vld [vmem:[%s9 + $0x4] sm:$0xf]
    %v464 = vld [vmem:[%s9 + $0x8] sm:$0xf]
    %v465 = vld [vmem:[%s9 + $0xc] sm:$0xf]
    %v466 = vld [vmem:[%s9 + $0x10] sm:$0xf]
    %v467 = vld [vmem:[%s9 + $0x14] sm:$0xf]
    %v468 = vld [vmem:[%s9 + $0x18] sm:$0xf]
    %v469 = vld [vmem:[%s9 + $0x1c] sm:$0xf]
    %v470 = vld [vmem:[%s10] sm:$0x1]
    %v472 = vlaneseq
    %v473 = vshrl.u32 %v472, 7
    %v474 = vsub.s32 0, %v473
    %v475 = vrot.slane %v470, %v474
    %v485 = vunpack.c.l.b16 %v462
    %v486 = vunpack.c.l.b16 %v463
    %v487 = vunpack.c.l.b16 %v464
    %v488 = vunpack.c.l.b16 %v465
    %v489 = vunpack.c.l.b16 %v466
    %v490 = vunpack.c.l.b16 %v467
    %v491 = vunpack.c.l.b16 %v468
    %v492 = vunpack.c.l.b16 %v469
    %v493 = vpack.c.b16 %v486, %v485
    %v494 = vpack.c.b16 %v488, %v487
    %v495 = vpack.c.b16 %v490, %v489
    %v496 = vpack.c.b16 %v492, %v491
    %v502 = vsel %vm359, %v461, 0
    %504 = vmatprep.subr.bf16.mxu0 0
    %505 = vmatpush1.bf16.msra.mxu0 %v493
    %506 = vmatprep.subr.bf16.mxu0 0
    %507 = vmatpush1.bf16.msra.mxu0 %v494
    %508 = vmatprep.subr.bf16.mxu0 0
    %509 = vmatpush1.bf16.msra.mxu0 %v495
    %510 = vmatprep.subr.bf16.mxu0 0
    %511 = vmatpush1.bf16.msra.mxu0 %v496
    %512 = vmatprep.subr.bf16.mxu0 0
    %513 = vmatpush1.bf16.msra.mxu0 0
    %514 = vmatprep.subr.bf16.mxu0 0
    %515 = vmatpush1.bf16.msra.mxu0 0
    %516 = vmatprep.subr.bf16.mxu0 0
    %517 = vmatpush1.bf16.msra.mxu0 0
    %518 = vmatprep.subr.bf16.mxu0 0
    %519 = vmatpush1.bf16.msra.mxu0 0
    %520 = vmatprep.subr.bf16.mxu0 0
    %521 = vmatpush1.bf16.msra.mxu0 0
    %522 = vmatprep.subr.bf16.mxu0 0
    %523 = vmatpush1.bf16.msra.mxu0 0
    %524 = vmatprep.subr.bf16.mxu0 0
    %525 = vmatpush1.bf16.msra.mxu0 0
    %526 = vmatprep.subr.bf16.mxu0 0
    %527 = vmatpush1.bf16.msra.mxu0 0
    %528 = vmatprep.subr.bf16.mxu0 0
    %529 = vmatpush1.bf16.msra.mxu0 0
    %530 = vmatprep.subr.bf16.mxu0 0
    %531 = vmatpush1.bf16.msra.mxu0 0
    %532 = vmatprep.subr.bf16.mxu0 0
    %533 = vmatpush1.bf16.msra.mxu0 0
    %534 = vmatprep.subr.bf16.mxu0 0
    %535 = vmatpush1.bf16.msra.mxu0 0
    %536 = vmatprep.mubr.bf16.mxu0 0
    %537 = vmatmul.mubr.bf16.gmra.mrb[0].mxu0 %v502
    %v538 = vpop.f32.mrb[0].mxu0
    %v539 = vadd.f32 %v475, %v538
    %v540 = vpop.f32.mrb[0].mxu0
    %v541 = vpop.f32.mrb[0].mxu0
    %v542 = vpop.f32.mrb[0].mxu0
    %543 = vdwg.mxu0
    %v544 = vmax.f32 %v539, 0.0
    %v545 = vpack.c.bf16 %v544, %v544
    %v546 = vld [vmem:[%s11] sm:$0xf]
    %v547 = vld [vmem:[%s11 + $0x4] sm:$0xf]
    %v548 = vld [vmem:[%s11 + $0x8] sm:$0xf]
    %v549 = vld [vmem:[%s11 + $0xc] sm:$0xf]
    %v550 = vld [vmem:[%s11 + $0x10] sm:$0xf]
    %v551 = vld [vmem:[%s11 + $0x14] sm:$0xf]
    %v552 = vld [vmem:[%s11 + $0x18] sm:$0xf]
    %v553 = vld [vmem:[%s11 + $0x1c] sm:$0xf]
    %v554 = vld [vmem:[%s11 + $0x20] sm:$0xf]
    %v555 = vld [vmem:[%s11 + $0x24] sm:$0xf]
    %v556 = vld [vmem:[%s11 + $0x28] sm:$0xf]
    %v557 = vld [vmem:[%s11 + $0x2c] sm:$0xf]
    %v558 = vld [vmem:[%s11 + $0x30] sm:$0xf]
    %v559 = vld [vmem:[%s11 + $0x34] sm:$0xf]
    %v560 = vld [vmem:[%s11 + $0x38] sm:$0xf]
    %v561 = vld [vmem:[%s11 + $0x3c] sm:$0xf]
    %v562 = vld [vmem:[%s12] sm:$0x1]
    %v564 = vlaneseq
    %v565 = vshrl.u32 %v564, 7
    %v566 = vsub.s32 0, %v565
    %v567 = vrot.slane %v562, %v566
    %v585 = vunpack.c.l.b16 %v546
    %v586 = vunpack.c.l.b16 %v547
    %v587 = vunpack.c.l.b16 %v548
    %v588 = vunpack.c.l.b16 %v549
    %v589 = vunpack.c.l.b16 %v550
    %v590 = vunpack.c.l.b16 %v551
    %v591 = vunpack.c.l.b16 %v552
    %v592 = vunpack.c.l.b16 %v553
    %v593 = vunpack.c.l.b16 %v554
    %v594 = vunpack.c.l.b16 %v555
    %v595 = vunpack.c.l.b16 %v556
    %v596 = vunpack.c.l.b16 %v557
    %v597 = vunpack.c.l.b16 %v558
    %v598 = vunpack.c.l.b16 %v559
    %v599 = vunpack.c.l.b16 %v560
    %v600 = vunpack.c.l.b16 %v561
    %v601 = vpack.c.b16 %v586, %v585
    %v602 = vpack.c.b16 %v588, %v587
    %v603 = vpack.c.b16 %v590, %v589
    %v604 = vpack.c.b16 %v592, %v591
    %v605 = vpack.c.b16 %v594, %v593
    %v606 = vpack.c.b16 %v596, %v595
    %v607 = vpack.c.b16 %v598, %v597
    %v608 = vpack.c.b16 %v600, %v599
    %617 = vmatprep.subr.bf16.mxu0 0
    %618 = vmatpush1.bf16.msra.mxu0 %v601
    %619 = vmatprep.subr.bf16.mxu0 0
    %620 = vmatpush1.bf16.msra.mxu0 %v602
    %621 = vmatprep.subr.bf16.mxu0 0
    %622 = vmatpush1.bf16.msra.mxu0 %v603
    %623 = vmatprep.subr.bf16.mxu0 0
    %624 = vmatpush1.bf16.msra.mxu0 %v604
    %625 = vmatprep.subr.bf16.mxu0 0
    %626 = vmatpush1.bf16.msra.mxu0 %v605
    %627 = vmatprep.subr.bf16.mxu0 0
    %628 = vmatpush1.bf16.msra.mxu0 %v606
    %629 = vmatprep.subr.bf16.mxu0 0
    %630 = vmatpush1.bf16.msra.mxu0 %v607
    %631 = vmatprep.subr.bf16.mxu0 0
    %632 = vmatpush1.bf16.msra.mxu0 %v608
    %633 = vmatprep.subr.bf16.mxu0 0
    %634 = vmatpush1.bf16.msra.mxu0 0
    %635 = vmatprep.subr.bf16.mxu0 0
    %636 = vmatpush1.bf16.msra.mxu0 0
    %637 = vmatprep.subr.bf16.mxu0 0
    %638 = vmatpush1.bf16.msra.mxu0 0
    %639 = vmatprep.subr.bf16.mxu0 0
    %640 = vmatpush1.bf16.msra.mxu0 0
    %641 = vmatprep.subr.bf16.mxu0 0
    %642 = vmatpush1.bf16.msra.mxu0 0
    %643 = vmatprep.subr.bf16.mxu0 0
    %644 = vmatpush1.bf16.msra.mxu0 0
    %645 = vmatprep.subr.bf16.mxu0 0
    %646 = vmatpush1.bf16.msra.mxu0 0
    %647 = vmatprep.subr.bf16.mxu0 0
    %648 = vmatpush1.bf16.msra.mxu0 0
    %649 = vmatprep.mubr.bf16.mxu0 0
    %650 = vmatmul.mubr.bf16.gmra.mrb[0].mxu0 %v545
    %v651 = vpop.f32.mrb[0].mxu0
    %v652 = vadd.f32 %v567, %v651
    %v653 = vpop.f32.mrb[0].mxu0
    %v654 = vpop.f32.mrb[0].mxu0
    %v655 = vpop.f32.mrb[0].mxu0
    %656 = vdwg.mxu0
    %v657 = vxor.u32 %v652, 2147483648
    %v658 = vmul.f32 %v657, 1.442695
    %v659 = vpow.pop %v658
    %v660 = vadd.f32 %v659, 1.0
    %v661 = vrcp.pop %v660
    %v662 = vmul.f32 1.0, %v661
    %663 = vst [vmem:[#allocation10] sm:$0xff] %v662
    // Predicated region
    $region70: #{tpu_custom_call.1} parent=1 // pred_check
      _
    $region71: #{tpu_custom_call.1} parent=1 // pred_check_branch
      %665 = sbr.rel (0) target = $region73
    $region72: #{tpu_custom_call.1} parent=1 // pred_region
      %s667 = ssub.s32 128, 128
      %668 = vsyncadd [#allocation4], %s667
      %s670 = sshll.u32 [#allocation10], 4
      %s671 = int_to_ptr.vmem [resolvable:$true] %s670
      %673 = dma.vmem_to_hbm [thread:$0]  %s671, 128, %s13, [#allocation4]
    $region73: #{tpu_custom_call.1} parent=1 // pred_fallthru
      _
    // Predicated region
    $region74: #{tpu_custom_call.1} parent=1 // pred_check
      _
    $region75: #{tpu_custom_call.1} parent=1 // pred_check_branch
      %675 = sbr.rel (0) target = $region77
    $region76: #{tpu_custom_call.1} parent=1 // pred_region
      %676 = dma.done [#allocation4], 128
    $region77: #{tpu_custom_call.1} parent=1 // pred_fallthru
      _
    %677 = vsyncpa [#allocation3], 1
    %678 = vsyncpa [#allocation6], 1
    %679 = vsyncpa [#allocation9], 1
    %680 = vsyncpa [#allocation4], 1

</llo_original>
